<compile_context>
chip_gen: v6e
topology: v6e:2x2x1
jax: 0.10.0
libtpu: 0.0.40
codegen_flags: <defaults>
</compile_context>

<pallas_src>
import functools

import jax
import jax.numpy as jnp
from jax import lax
from jax.experimental import pallas as pl
from jax.experimental.pallas import tpu as pltpu

EPS = 1e-5                       # nn.BatchNorm2d default eps
VMEM_LIMIT = 32 * 1024 * 1024    # safe on v5e/v6e/v7x (v7x physical VMEM = 64 MiB)
VMEM_BUDGET = 24 * 1024 * 1024   # per-step working-set target (headroom under limit)


def _conv_tile(x_ref, wb_ref):
    """3x3 conv (bias-free) of one tile of TB whole padded images.

    x_ref:  (TB, H+2, (W+2)*Cin)   padded input rows, lane dim = (wp, ci)
    wb_ref: (3, (W+2)*Cin, W*Cout) banded conv weights, one slab per kh tap
    returns (TB*H, W*Cout) f32     lane dim = (w, co)
    """
    xin = x_ref[...]
    tb, hp, l = xin.shape
    h = hp - 2
    acc = None
    for kh in range(3):            # 3 MXU matmuls, K = (W+2)*Cin, f32 accumulation
        xs = xin[:, kh:kh + h, :].reshape(tb * h, l)
        part = jnp.dot(xs, wb_ref[kh], preferred_element_type=jnp.float32)
        acc = part if acc is None else acc + part
    return acc


def conv_stats_kernel(x_ref, wb_ref, stats_ref, acc_ref):
    """Pass 1: per-lane [sum, sum-of-squares] of the bias-free conv output,
    accumulated in VMEM scratch across the grid, written out once at the end."""
    g = pl.program_id(0)

    @pl.when(g == 0)
    def _init():
        acc_ref[...] = jnp.zeros_like(acc_ref)

    y = _conv_tile(x_ref, wb_ref)
    acc_ref[0:1, :] = acc_ref[0:1, :] + jnp.sum(y, axis=0, keepdims=True)
    acc_ref[1:2, :] = acc_ref[1:2, :] + jnp.sum(y * y, axis=0, keepdims=True)

    @pl.when(g == pl.num_programs(0) - 1)
    def _finalize():
        stats_ref[...] = acc_ref[...]


def conv_bn_relu_kernel(x_ref, wb_ref, scale_ref, shift_ref, o_ref):
    """Pass 2: recompute the (cheap) conv tile, fuse BN scale/shift + ReLU."""
    y = _conv_tile(x_ref, wb_ref)
    o_ref[...] = jnp.maximum(
        y * scale_ref[...] + shift_ref[...], 0.0).astype(o_ref.dtype)


def _banded_conv_weights(weight_oihw, W):
    """(Cout,Cin,3,3) -> (3, (W+2)*Cin, W*Cout) banded ("Toeplitz") matmul weights.

    wb[kh, wp*Cin+ci, w*Cout+co] = weight[co,ci,kh,wp-w] if 0 <= wp-w <= 2 else 0
    so (flattened padded input row) @ wb[kh] is that row's contribution to the
    (w, co)-flattened output row.
    """
    Cout, Cin, _, _ = weight_oihw.shape
    Wp = W + 2
    w_hw = jnp.transpose(weight_oihw, (2, 3, 1, 0))          # (kh, kw, Cin, Cout)
    kw = jnp.arange(Wp)[:, None] - jnp.arange(W)[None, :]    # (Wp, W)
    valid = (kw >= 0) & (kw <= 2)
    wb = w_hw[:, jnp.clip(kw, 0, 2)]                         # (3, Wp, W, Cin, Cout)
    wb = wb * valid[None, :, :, None, None]
    wb = jnp.transpose(wb, (0, 1, 3, 2, 4))                  # (3, Wp, Cin, W, Cout)
    return wb.reshape(3, Wp * Cin, W * Cout)


def _pick_images_per_step(N, H, W, Cin, Cout, target_rows, itemsize=4):
    """Largest whole-image count per grid step s.t. the matmul M stays under
    target_rows and the per-step VMEM working set fits VMEM_BUDGET, preferring
    >= 2 grid steps so the parallel axis can shard across v7x TensorCores."""
    Hp, Wp = H + 2, W + 2
    L, WC = Wp * Cin, W * Cout
    best = 1
    for tb in range(1, N + 1):
        if N % tb:
            continue
        rows = tb * H
        # double-buffered x tile + resident banded weights + double-buffered out
        vmem = (2 * tb * Hp * L + 3 * L * WC + 2 * rows * WC + 4 * WC) * itemsize
        if rows <= target_rows and vmem <= VMEM_BUDGET and (N // tb >= 2 or N == 1):
            best = tb
    return best


@functools.partial(jax.jit, static_argnames=("target_rows", "matmul_dtype"))
def conv_block_forward(x_nchw, weight_oihw, bias, gamma, beta,
                       target_rows=512, matmul_dtype=jnp.float32):
    """Fused ConvBlock forward. Accepts/returns NCHW like the PyTorch module."""
    N, Cin, H, W = x_nchw.shape
    Cout = weight_oihw.shape[0]
    Hp, Wp = H + 2, W + 2
    L = Wp * Cin
    WC = W * Cout
    f32 = jnp.float32

    TB = _pick_images_per_step(N, H, W, Cin, Cout, target_rows,
                               itemsize=jnp.dtype(matmul_dtype).itemsize)
    n_steps = N // TB
    assert (TB * H) % 8 == 0, "tile rows (TB*H) must be a multiple of 8"

    # ---- layout prep (one transpose + pad, NO halo gather) -----------------
    x = jnp.transpose(x_nchw, (0, 2, 3, 1)).astype(f32)          # (N,H,W,Cin)
    x = jnp.pad(x, ((0, 0), (1, 1), (1, 1), (0, 0)))             # (N,Hp,Wp,Cin)
    x = x.reshape(N, Hp, L).astype(matmul_dtype)

    wb = _banded_conv_weights(weight_oihw.astype(f32), W).astype(matmul_dtype)

    x_spec = pl.BlockSpec((TB, Hp, L), lambda g: (g, 0, 0))
    wb_spec = pl.BlockSpec((3, L, WC), lambda g: (0, 0, 0))      # VMEM-resident

    # ---- pass 1: bias-free conv -> per-lane BN partials (no y writeback) ----
    stats = pl.pallas_call(
        conv_stats_kernel,
        out_shape=jax.ShapeDtypeStruct((2, WC), f32),
        grid=(n_steps,),
        in_specs=[x_spec, wb_spec],
        out_specs=pl.BlockSpec((2, WC), lambda g: (0, 0)),
        scratch_shapes=[pltpu.VMEM((2, WC), f32)],
        compiler_params=pltpu.CompilerParams(
            dimension_semantics=("arbitrary",),      # scratch carry across grid
            vmem_limit_bytes=VMEM_LIMIT),
    )(x, wb)

    # ---- tiny O(Cout) glue: fold lanes -> channels, BN coefficients ---------
    per_ch = stats.reshape(2, W, Cout).sum(axis=1)
    cnt = jnp.float32(N * H * W)
    mean_nb = per_ch[0] / cnt                    # mean of bias-free conv output
    var = per_ch[1] / cnt - mean_nb * mean_nb    # biased var (bias-invariant)
    scale = gamma.astype(f32) * lax.rsqrt(var + EPS)
    # BN(conv + bias) = conv*scale + (beta - mean_nb*scale): conv bias folds away.
    shift = beta.astype(f32) - mean_nb * scale
    scale_row = jnp.tile(scale, W).reshape(1, WC)
    shift_row = jnp.tile(shift, W).reshape(1, WC)

    # ---- pass 2: recompute conv (cheap), fused BN scale/shift + ReLU --------
    out2d = pl.pallas_call(
        conv_bn_relu_kernel,
        out_shape=jax.ShapeDtypeStruct((N * H, WC), f32),
        grid=(n_steps,),
        in_specs=[x_spec, wb_spec,
                  pl.BlockSpec((1, WC), lambda g: (0, 0)),
                  pl.BlockSpec((1, WC), lambda g: (0, 0))],
        out_specs=pl.BlockSpec((TB * H, WC), lambda g: (g, 0)),
        compiler_params=pltpu.CompilerParams(
            dimension_semantics=("parallel",),       # v7x megacore sharding
            vmem_limit_bytes=VMEM_LIMIT),
    )(x, wb, scale_row, shift_row)

    # (N*H, W*Cout) -> NCHW to match the PyTorch output convention.
    return jnp.transpose(out2d.reshape(N, H, W, Cout), (0, 3, 1, 2))


def conv_block_reference(x_nchw, weight_oihw, bias, gamma, beta):
    """Pure-JAX reference with identical semantics, for correctness checking."""
    y = lax.conv_general_dilated(
        x_nchw.astype(jnp.float32), weight_oihw.astype(jnp.float32),
        window_strides=(1, 1), padding=((1, 1), (1, 1)),
        dimension_numbers=("NCHW", "OIHW", "NCHW"))
    y = y + bias.reshape(1, -1, 1, 1)
    mean = jnp.mean(y, axis=(0, 2, 3), keepdims=True)
    var = jnp.mean((y - mean) ** 2, axis=(0, 2, 3), keepdims=True)
    y = (y - mean) * lax.rsqrt(var + EPS)
    y = y * gamma.reshape(1, -1, 1, 1) + beta.reshape(1, -1, 1, 1)
    return jnp.maximum(y, 0.0)


if __name__ == "__main__":
    # Small shapes consistent with the module: batch=2, Cin=4, Cout=8, 16x16
    N, Cin, Cout, H, W = 2, 4, 8, 16, 16

    key = jax.random.PRNGKey(0)
    kx, kw_, kb = jax.random.split(key, 3)

    x = jax.random.normal(kx, (N, Cin, H, W), dtype=jnp.float32)
    weight = jax.random.normal(kw_, (Cout, Cin, 3, 3), dtype=jnp.float32) * 0.1
    bias = jax.random.normal(kb, (Cout,), dtype=jnp.float32) * 0.1
    gamma = jnp.ones((Cout,), dtype=jnp.float32)    # BN default weight=1
    beta = jnp.zeros((Cout,), dtype=jnp.float32)    # BN default bias=0

    out = conv_block_forward(x, weight, bias, gamma, beta)
    out = jax.block_until_ready(out)

    ref = conv_block_reference(x, weight, bias, gamma, beta)
    assert out.shape == (N, Cout, H, W)
    # Tolerance for the default matmul_dtype=float32 path; loosen (~2e-2) if
    # matmul_dtype=bfloat16 is enabled, since BN stats then see bf16 operands.
    max_err = jnp.max(jnp.abs(out - ref))
    assert jnp.allclose(out, ref, atol=2e-4, rtol=2e-4), f"max abs err {max_err}"

    print("KERNEL_OK")
</pallas_src>

<mosaic_0001>
module attributes {stable_mosaic.version = 11 : i64} {
  func.func @conv_stats_kernel(%arg0: i32, %arg1: memref<1x18x72xf32, #tpu.memory_space<vmem>>, %arg2: memref<3x72x128xf32, #tpu.memory_space<vmem>>, %arg3: memref<2x128xf32, #tpu.memory_space<vmem>>, %arg4: memref<2x128xf32, #tpu.memory_space<vmem>>) attributes {dimension_semantics = [#tpu.dimension_semantics<arbitrary>], iteration_bounds = array<i64: 2>, scalar_prefetch = 0 : i64, scratch_operands = 1 : i64, tpu.core_type = #tpu.core_type<tc>, window_params = [{transform_indices = @transform_0, window_bounds = array<i64: 1, 18, 72>}, {pipeline_mode = #tpu.pipeline_mode<synchronous>, transform_indices = @transform_1, window_bounds = array<i64: 3, 72, 128>}, {pipeline_mode = #tpu.pipeline_mode<synchronous>, transform_indices = @transform_2, window_bounds = array<i64: 2, 128>}]} {
    %c0_i32 = arith.constant 0 : i32
    %0 = arith.cmpi eq, %arg0, %c0_i32 : i32
    %1 = arith.extui %0 : i1 to i32
    %c0_i32_0 = arith.constant 0 : i32
    %2 = arith.cmpi ne, %1, %c0_i32_0 : i32
    scf.if %2 {
      %cst_23 = arith.constant 0.000000e+00 : f32
      %35 = vector.broadcast %cst_23 : f32 to vector<2x128xf32>
      %c0_24 = arith.constant 0 : index
      %c0_25 = arith.constant 0 : index
      %36 = vector.load %arg4[%c0_24, %c0_25] : memref<2x128xf32, #tpu.memory_space<vmem>>, vector<2x128xf32>
      tpu.vector_store %arg4[%c0_24, %c0_25], %35 {strides = array<i32>} : memref<2x128xf32, #tpu.memory_space<vmem>>, vector<2x128xf32>,
    } else {
    }
    %c0 = arith.constant 0 : index
    %c0_1 = arith.constant 0 : index
    %c0_2 = arith.constant 0 : index
    %3 = vector.load %arg1[%c0, %c0_1, %c0_2] : memref<1x18x72xf32, #tpu.memory_space<vmem>>, vector<1x18x72xf32>
    %4 = vector.extract_strided_slice %3 {offsets = [0, 0, 0], sizes = [1, 16, 72], strides = [1, 1, 1]} : vector<1x18x72xf32> to vector<1x16x72xf32>
    %5 = vector.shape_cast %4 : vector<1x16x72xf32> to vector<16x72xf32>
    %c0_3 = arith.constant 0 : index
    %c0_4 = arith.constant 0 : index
    %c0_5 = arith.constant 0 : index
    %6 = vector.load %arg2[%c0_3, %c0_4, %c0_5] : memref<3x72x128xf32, #tpu.memory_space<vmem>>, vector<1x72x128xf32>
    %7 = vector.shape_cast %6 : vector<1x72x128xf32> to vector<72x128xf32>
    %cst = arith.constant dense<0.000000e+00> : vector<16x128xf32>
    %8 = tpu.matmul %5, %7, %cst {dimension_numbers = #tpu.dot_dimension_numbers<[1], [0], [0], [1], [0, 0, 1, 1], [], []>} : vector<16x72xf32>, vector<72x128xf32>, vector<16x128xf32> -> vector<16x128xf32>
    %9 = vector.extract_strided_slice %3 {offsets = [0, 1, 0], sizes = [1, 16, 72], strides = [1, 1, 1]} : vector<1x18x72xf32> to vector<1x16x72xf32>
    %10 = vector.shape_cast %9 : vector<1x16x72xf32> to vector<16x72xf32>
    %c1 = arith.constant 1 : index
    %c0_6 = arith.constant 0 : index
    %c0_7 = arith.constant 0 : index
    %11 = vector.load %arg2[%c1, %c0_6, %c0_7] : memref<3x72x128xf32, #tpu.memory_space<vmem>>, vector<1x72x128xf32>
    %12 = vector.shape_cast %11 : vector<1x72x128xf32> to vector<72x128xf32>
    %cst_8 = arith.constant dense<0.000000e+00> : vector<16x128xf32>
    %13 = tpu.matmul %10, %12, %cst_8 {dimension_numbers = #tpu.dot_dimension_numbers<[1], [0], [0], [1], [0, 0, 1, 1], [], []>} : vector<16x72xf32>, vector<72x128xf32>, vector<16x128xf32> -> vector<16x128xf32>
    %14 = arith.addf %8, %13 : vector<16x128xf32>
    %15 = vector.extract_strided_slice %3 {offsets = [0, 2, 0], sizes = [1, 16, 72], strides = [1, 1, 1]} : vector<1x18x72xf32> to vector<1x16x72xf32>
    %16 = vector.shape_cast %15 : vector<1x16x72xf32> to vector<16x72xf32>
    %c2 = arith.constant 2 : index
    %c0_9 = arith.constant 0 : index
    %c0_10 = arith.constant 0 : index
    %17 = vector.load %arg2[%c2, %c0_9, %c0_10] : memref<3x72x128xf32, #tpu.memory_space<vmem>>, vector<1x72x128xf32>
    %18 = vector.shape_cast %17 : vector<1x72x128xf32> to vector<72x128xf32>
    %cst_11 = arith.constant dense<0.000000e+00> : vector<16x128xf32>
    %19 = tpu.matmul %16, %18, %cst_11 {dimension_numbers = #tpu.dot_dimension_numbers<[1], [0], [0], [1], [0, 0, 1, 1], [], []>} : vector<16x72xf32>, vector<72x128xf32>, vector<16x128xf32> -> vector<16x128xf32>
    %20 = arith.addf %14, %19 : vector<16x128xf32>
    %c0_12 = arith.constant 0 : index
    %c0_13 = arith.constant 0 : index
    %21 = vector.load %arg4[%c0_12, %c0_13] : memref<2x128xf32, #tpu.memory_space<vmem>>, vector<1x128xf32>
    %cst_14 = arith.constant dense<0.000000e+00> : vector<128xf32>
    %22 = vector.multi_reduction <add>, %20, %cst_14 [0] : vector<16x128xf32> to vector<128xf32>
    %23 = vector.shape_cast %22 : vector<128xf32> to vector<1x128xf32>
    %24 = arith.addf %21, %23 : vector<1x128xf32>
    %c0_15 = arith.constant 0 : index
    %c0_16 = arith.constant 0 : index
    %25 = vector.load %arg4[%c0_15, %c0_16] : memref<2x128xf32, #tpu.memory_space<vmem>>, vector<1x128xf32>
    tpu.vector_store %arg4[%c0_15, %c0_16], %24 {strides = array<i32>} : memref<2x128xf32, #tpu.memory_space<vmem>>, vector<1x128xf32>,
    %c1_17 = arith.constant 1 : index
    %c0_18 = arith.constant 0 : index
    %26 = vector.load %arg4[%c1_17, %c0_18] : memref<2x128xf32, #tpu.memory_space<vmem>>, vector<1x128xf32>
    %27 = arith.mulf %20, %20 : vector<16x128xf32>
    %cst_19 = arith.constant dense<0.000000e+00> : vector<128xf32>
    %28 = vector.multi_reduction <add>, %27, %cst_19 [0] : vector<16x128xf32> to vector<128xf32>
    %29 = vector.shape_cast %28 : vector<128xf32> to vector<1x128xf32>
    %30 = arith.addf %26, %29 : vector<1x128xf32>
    %c1_20 = arith.constant 1 : index
    %c0_21 = arith.constant 0 : index
    %31 = vector.load %arg4[%c1_20, %c0_21] : memref<2x128xf32, #tpu.memory_space<vmem>>, vector<1x128xf32>
    tpu.vector_store %arg4[%c1_20, %c0_21], %30 {strides = array<i32>} : memref<2x128xf32, #tpu.memory_space<vmem>>, vector<1x128xf32>,
    %c1_i32 = arith.constant 1 : i32
    %32 = arith.cmpi eq, %arg0, %c1_i32 : i32
    %33 = arith.extui %32 : i1 to i32
    %c0_i32_22 = arith.constant 0 : i32
    %34 = arith.cmpi ne, %33, %c0_i32_22 : i32
    scf.if %34 {
      %c0_23 = arith.constant 0 : index
      %c0_24 = arith.constant 0 : index
      %35 = vector.load %arg4[%c0_23, %c0_24] : memref<2x128xf32, #tpu.memory_space<vmem>>, vector<2x128xf32>
      %c0_25 = arith.constant 0 : index
      %c0_26 = arith.constant 0 : index
      %36 = vector.load %arg3[%c0_25, %c0_26] : memref<2x128xf32, #tpu.memory_space<vmem>>, vector<2x128xf32>
      tpu.vector_store %arg3[%c0_25, %c0_26], %35 {strides = array<i32>} : memref<2x128xf32, #tpu.memory_space<vmem>>, vector<2x128xf32>,
    } else {
    }
    return
  }
  func.func @transform_0(%arg0: i32) -> (i32, i32, i32) {
    %c0_i32 = arith.constant 0 : i32
    %c0_i32_0 = arith.constant 0 : i32
    %c0_i32_1 = arith.constant 0 : i32
    return %arg0, %c0_i32, %c0_i32_0 : i32, i32, i32
  }
  func.func @transform_1(%arg0: i32) -> (i32, i32, i32) {
    %c0_i32 = arith.constant 0 : i32
    %c0_i32_0 = arith.constant 0 : i32
    %c0_i32_1 = arith.constant 0 : i32
    %c0_i32_2 = arith.constant 0 : i32
    return %c0_i32, %c0_i32_0, %c0_i32_1 : i32, i32, i32
  }
  func.func @transform_2(%arg0: i32) -> (i32, i32) {
    %c0_i32 = arith.constant 0 : i32
    %c0_i32_0 = arith.constant 0 : i32
    %c0_i32_1 = arith.constant 0 : i32
    return %c0_i32, %c0_i32_0 : i32, i32
  }
}

module attributes {stable_mosaic.version = 11 : i64} {
  func.func @conv_bn_relu_kernel(%arg0: i32, %arg1: memref<1x18x72xf32, #tpu.memory_space<vmem>>, %arg2: memref<3x72x128xf32, #tpu.memory_space<vmem>>, %arg3: memref<1x128xf32, #tpu.memory_space<vmem>>, %arg4: memref<1x128xf32, #tpu.memory_space<vmem>>, %arg5: memref<16x128xf32, #tpu.memory_space<vmem>>) attributes {dimension_semantics = [#tpu.dimension_semantics<parallel>], iteration_bounds = array<i64: 2>, scalar_prefetch = 0 : i64, scratch_operands = 0 : i64, tpu.core_type = #tpu.core_type<tc>, window_params = [{transform_indices = @transform_0, window_bounds = array<i64: 1, 18, 72>}, {pipeline_mode = #tpu.pipeline_mode<synchronous>, transform_indices = @transform_1, window_bounds = array<i64: 3, 72, 128>}, {pipeline_mode = #tpu.pipeline_mode<synchronous>, transform_indices = @transform_2, window_bounds = array<i64: 1, 128>}, {pipeline_mode = #tpu.pipeline_mode<synchronous>, transform_indices = @transform_3, window_bounds = array<i64: 1, 128>}, {transform_indices = @transform_4, window_bounds = array<i64: 16, 128>}]} {
    %c0 = arith.constant 0 : index
    %c0_0 = arith.constant 0 : index
    %c0_1 = arith.constant 0 : index
    %0 = vector.load %arg1[%c0, %c0_0, %c0_1] : memref<1x18x72xf32, #tpu.memory_space<vmem>>, vector<1x18x72xf32>
    %1 = vector.extract_strided_slice %0 {offsets = [0, 0, 0], sizes = [1, 16, 72], strides = [1, 1, 1]} : vector<1x18x72xf32> to vector<1x16x72xf32>
    %2 = vector.shape_cast %1 : vector<1x16x72xf32> to vector<16x72xf32>
    %c0_2 = arith.constant 0 : index
    %c0_3 = arith.constant 0 : index
    %c0_4 = arith.constant 0 : index
    %3 = vector.load %arg2[%c0_2, %c0_3, %c0_4] : memref<3x72x128xf32, #tpu.memory_space<vmem>>, vector<1x72x128xf32>
    %4 = vector.shape_cast %3 : vector<1x72x128xf32> to vector<72x128xf32>
    %cst = arith.constant dense<0.000000e+00> : vector<16x128xf32>
    %5 = tpu.matmul %2, %4, %cst {dimension_numbers = #tpu.dot_dimension_numbers<[1], [0], [0], [1], [0, 0, 1, 1], [], []>} : vector<16x72xf32>, vector<72x128xf32>, vector<16x128xf32> -> vector<16x128xf32>
    %6 = vector.extract_strided_slice %0 {offsets = [0, 1, 0], sizes = [1, 16, 72], strides = [1, 1, 1]} : vector<1x18x72xf32> to vector<1x16x72xf32>
    %7 = vector.shape_cast %6 : vector<1x16x72xf32> to vector<16x72xf32>
    %c1 = arith.constant 1 : index
    %c0_5 = arith.constant 0 : index
    %c0_6 = arith.constant 0 : index
    %8 = vector.load %arg2[%c1, %c0_5, %c0_6] : memref<3x72x128xf32, #tpu.memory_space<vmem>>, vector<1x72x128xf32>
    %9 = vector.shape_cast %8 : vector<1x72x128xf32> to vector<72x128xf32>
    %cst_7 = arith.constant dense<0.000000e+00> : vector<16x128xf32>
    %10 = tpu.matmul %7, %9, %cst_7 {dimension_numbers = #tpu.dot_dimension_numbers<[1], [0], [0], [1], [0, 0, 1, 1], [], []>} : vector<16x72xf32>, vector<72x128xf32>, vector<16x128xf32> -> vector<16x128xf32>
    %11 = arith.addf %5, %10 : vector<16x128xf32>
    %12 = vector.extract_strided_slice %0 {offsets = [0, 2, 0], sizes = [1, 16, 72], strides = [1, 1, 1]} : vector<1x18x72xf32> to vector<1x16x72xf32>
    %13 = vector.shape_cast %12 : vector<1x16x72xf32> to vector<16x72xf32>
    %c2 = arith.constant 2 : index
    %c0_8 = arith.constant 0 : index
    %c0_9 = arith.constant 0 : index
    %14 = vector.load %arg2[%c2, %c0_8, %c0_9] : memref<3x72x128xf32, #tpu.memory_space<vmem>>, vector<1x72x128xf32>
    %15 = vector.shape_cast %14 : vector<1x72x128xf32> to vector<72x128xf32>
    %cst_10 = arith.constant dense<0.000000e+00> : vector<16x128xf32>
    %16 = tpu.matmul %13, %15, %cst_10 {dimension_numbers = #tpu.dot_dimension_numbers<[1], [0], [0], [1], [0, 0, 1, 1], [], []>} : vector<16x72xf32>, vector<72x128xf32>, vector<16x128xf32> -> vector<16x128xf32>
    %17 = arith.addf %11, %16 : vector<16x128xf32>
    %c0_11 = arith.constant 0 : index
    %c0_12 = arith.constant 0 : index
    %18 = vector.load %arg3[%c0_11, %c0_12] : memref<1x128xf32, #tpu.memory_space<vmem>>, vector<1x128xf32>
    %19 = vector.broadcast %18 : vector<1x128xf32> to vector<16x128xf32>
    %20 = arith.mulf %17, %19 : vector<16x128xf32>
    %c0_13 = arith.constant 0 : index
    %c0_14 = arith.constant 0 : index
    %21 = vector.load %arg4[%c0_13, %c0_14] : memref<1x128xf32, #tpu.memory_space<vmem>>, vector<1x128xf32>
    %22 = vector.broadcast %21 : vector<1x128xf32> to vector<16x128xf32>
    %23 = arith.addf %20, %22 : vector<16x128xf32>
    %cst_15 = arith.constant 0.000000e+00 : f32
    %24 = vector.broadcast %cst_15 : f32 to vector<16x128xf32>
    %25 = arith.maximumf %23, %24 : vector<16x128xf32>
    %c0_16 = arith.constant 0 : index
    %c0_17 = arith.constant 0 : index
    %26 = vector.load %arg5[%c0_16, %c0_17] : memref<16x128xf32, #tpu.memory_space<vmem>>, vector<16x128xf32>
    tpu.vector_store %arg5[%c0_16, %c0_17], %25 {strides = array<i32>} : memref<16x128xf32, #tpu.memory_space<vmem>>, vector<16x128xf32>,
    return
  }
  func.func @transform_0(%arg0: i32) -> (i32, i32, i32) {
    %c0_i32 = arith.constant 0 : i32
    %c0_i32_0 = arith.constant 0 : i32
    %c0_i32_1 = arith.constant 0 : i32
    return %arg0, %c0_i32, %c0_i32_0 : i32, i32, i32
  }
  func.func @transform_1(%arg0: i32) -> (i32, i32, i32) {
    %c0_i32 = arith.constant 0 : i32
    %c0_i32_0 = arith.constant 0 : i32
    %c0_i32_1 = arith.constant 0 : i32
    %c0_i32_2 = arith.constant 0 : i32
    return %c0_i32, %c0_i32_0, %c0_i32_1 : i32, i32, i32
  }
  func.func @transform_2(%arg0: i32) -> (i32, i32) {
    %c0_i32 = arith.constant 0 : i32
    %c0_i32_0 = arith.constant 0 : i32
    %c0_i32_1 = arith.constant 0 : i32
    return %c0_i32, %c0_i32_0 : i32, i32
  }
  func.func @transform_3(%arg0: i32) -> (i32, i32) {
    %c0_i32 = arith.constant 0 : i32
    %c0_i32_0 = arith.constant 0 : i32
    %c0_i32_1 = arith.constant 0 : i32
    return %c0_i32, %c0_i32_0 : i32, i32
  }
  func.func @transform_4(%arg0: i32) -> (i32, i32) {
    %c0_i32 = arith.constant 0 : i32
    %c0_i32_0 = arith.constant 0 : i32
    return %arg0, %c0_i32 : i32, i32
  }
}

</mosaic_0001>

<llo_original>
// kernel: tile.13
$region0: #{tile.13}
  #allocation0 [shape = 's32[1]{0}', space=sflag, size = 0x4, scoped, tag = 'scoped memory for tile.13']
  %s0 = inlined_call_operand.vmem [shape: f32[8], index: 0, kind: input, shape index: {}]
  %s1 = inlined_call_operand.vmem [shape: f32[16,8], index: 1, kind: output, shape index: {}]
  // Predicated region
  $region2: #{tile.13} parent=0 // pred_check
    _
  $region3: #{tile.13} parent=0 // pred_check_branch
    %3 = sbr.rel (0) target = $region5
  $region4: #{tile.13} parent=0 // pred_region
    _
  $region5: #{tile.13} parent=0 // pred_fallthru
    _
  %v4 = vld [vmem:[%s0] ss:$0 sm:$0xff]
  %5 = vst [vmem:[%s1] sm:$0xff] %v4
  %s6 = scalar_lea.vmem %s1, 8
  %7 = vst [vmem:[%s6] sm:$0xff] %v4

// kernel: conv_block_forward.2
$region0: #{conv_block_forward.2}
  #allocation0 [shape = 'u32[]', space=smem, size = 0x4, offset = 0x4, fixed_abs, tag = 'smem constant byte address 0x4 - core index']
  #allocation1 [shape = 'u32[144,128]{1,0:T(1,128)}', space=vmem, size = 0x12000, scoped, tag = 'internal scratch']
  #allocation2 [shape = 'f32[2,128]{1,0:T(2,128)}', space=vmem, size = 0x400, scoped, tag = 'scratch operand']
  %s0 = inlined_call_operand.vmem [shape: f32[2,18,72], index: 0, kind: input, shape index: {}]
  %s1 = inlined_call_operand.vmem [shape: f32[3,72,128], index: 1, kind: input, shape index: {}]
  %s2 = inlined_call_operand.vmem [shape: f32[2,128], index: 2, kind: output, shape index: {}]
  %s3 = sld [smem:[#allocation0]]
  $region49: #{conv_block_forward.2} parent=0
    _
  %s5 = ssub.s32 1, %s3
  %s6 = scalar_select 0, %s5, %s3
  loop: start=0, step=1, limit=4
  $region2: #{conv_block_forward.2} parent=0 // loop_pre_header
    _
  $region3: #{conv_block_forward.2} parent=0 // loop_header
    %s8 = sphi 0, %s12
    %p9 = scmp.ge.s32.totalorder %s8, 4
    %s18 = sphi 0, %s20
    %s21 = sphi 0, %s18
    %s22 = sphi 0, %s21
    %s38 = sphi 0, %s22
    %s42 = sphi 0, %s42
    %s44 = sphi 0, %s42
    %s45 = sphi 0, %s44
    %s59 = sphi 0, %s45
    %s63 = sphi 0, %s63
    %s65 = sphi 0, %s63
    %s66 = sphi 0, %s65
    %s80 = sphi 0, %s66
  $region4: #{conv_block_forward.2} parent=0 // loop_header_branch
    %11 = sbr.rel (%p9) target = $region8
  $region5: #{conv_block_forward.2} parent=0 // loop_body
    %s13 = ssub.s32 %s8, 1
    %s14 = ssub.s32 %s8, 2
    %s15 = sadd.s32 %s8, 1
    %s16 = ssub.s32 %s8, %s15
    %p17 = scmp.eq.s32.totalorder %s16, 0
    %s19 = sadd.s32 %s18, 1
    %s20 = scalar_select %p17, %s18, %s19
    %p23 = pneg %p17
    %p24 = scmp.eq.s32.totalorder %s8, 1
    %p25 = por %p23, %p24
    %p26 = scmp.ne.s32.totalorder %s18, %s21
    %p27 = scmp.eq.s32.totalorder %s8, 0
    %p28 = por %p26, %p27
    %p29 = scmp.ne.s32.totalorder %s18, %s21
    %p30 = scmp.eq.s32.totalorder %s13, 1
    %p31 = por %p29, %p30
    %p32 = scmp.ne.s32.totalorder %s21, %s22
    %p33 = scmp.eq.s32.totalorder %s13, 0
    %p34 = por %p32, %p33
    %p35 = scmp.ne.s32.totalorder %s21, %s22
    %p36 = scmp.eq.s32.totalorder %s14, 1
    %p37 = por %p35, %p36
    %p39 = scmp.ne.s32.totalorder %s22, %s38
    %p40 = scmp.eq.s32.totalorder %s14, 0
    %p41 = por %p39, %p40
    %s43 = sadd.s32 %s42, 1
    %p46 = scmp.eq.s32.totalorder %s8, 1
    %p47 = scmp.ne.s32.totalorder %s42, %s44
    %p48 = scmp.eq.s32.totalorder %s8, 0
    %p49 = por %p47, %p48
    %p50 = scmp.ne.s32.totalorder %s42, %s44
    %p51 = scmp.eq.s32.totalorder %s13, 1
    %p52 = por %p50, %p51
    %p53 = scmp.ne.s32.totalorder %s44, %s45
    %p54 = scmp.eq.s32.totalorder %s13, 0
    %p55 = por %p53, %p54
    %p56 = scmp.ne.s32.totalorder %s44, %s45
    %p57 = scmp.eq.s32.totalorder %s14, 1
    %p58 = por %p56, %p57
    %p60 = scmp.ne.s32.totalorder %s45, %s59
    %p61 = scmp.eq.s32.totalorder %s14, 0
    %p62 = por %p60, %p61
    %s64 = sadd.s32 %s63, 1
    %p67 = scmp.eq.s32.totalorder %s8, 1
    %p68 = scmp.ne.s32.totalorder %s63, %s65
    %p69 = scmp.eq.s32.totalorder %s8, 0
    %p70 = por %p68, %p69
    %p71 = scmp.ne.s32.totalorder %s63, %s65
    %p72 = scmp.eq.s32.totalorder %s13, 1
    %p73 = por %p71, %p72
    %p74 = scmp.ne.s32.totalorder %s65, %s66
    %p75 = scmp.eq.s32.totalorder %s13, 0
    %p76 = por %p74, %p75
    %p77 = scmp.ne.s32.totalorder %s65, %s66
    %p78 = scmp.eq.s32.totalorder %s14, 1
    %p79 = por %p77, %p78
    %p81 = scmp.ne.s32.totalorder %s66, %s80
    %p82 = scmp.eq.s32.totalorder %s14, 0
    %p83 = por %p81, %p82
    %p84 = scmp.le.s32.totalorder 1, %s8
    %p85 = scmp.lt.s32.totalorder %s8, 3
    %p86 = pnand %p84, %p85
    %p87 = pneg %p86
    // Predicated region
    $region9: #{conv_block_forward.2} parent=5 // pred_check
      _
    $region10: #{conv_block_forward.2} parent=5 // pred_check_branch
      %89 = sbr.rel (%p86) target = $region12
    $region11: #{conv_block_forward.2} parent=5 // pred_region
      %s90 = ssub.s32 %s8, 1
      // Predicated region
      $region13: #{conv_block_forward.2} parent=11 // pred_check
        %p91 = pneg %p55
      $region14: #{conv_block_forward.2} parent=11 // pred_check_branch
        %93 = sbr.rel (%p91) target = $region16
      $region15: #{conv_block_forward.2} parent=11 // pred_region
        _
      $region16: #{conv_block_forward.2} parent=11 // pred_fallthru
        _
    $region12: #{conv_block_forward.2} parent=5 // pred_fallthru
      _
    %p94 = scmp.lt.s32.totalorder %s8, 2
    // Predicated region
    $region17: #{conv_block_forward.2} parent=5 // pred_check
      %p95 = pneg %p94
    $region18: #{conv_block_forward.2} parent=5 // pred_check_branch
      %97 = sbr.rel (%p95) target = $region20
    $region19: #{conv_block_forward.2} parent=5 // pred_region
      // Predicated region
      $region21: #{conv_block_forward.2} parent=19 // pred_check
        %p98 = pneg %p28
      $region22: #{conv_block_forward.2} parent=19 // pred_check_branch
        %100 = sbr.rel (%p98) target = $region24
      $region23: #{conv_block_forward.2} parent=19 // pred_region
        %p101 = scmp.lt.s32.totalorder %s8, 1
        %s102 = scalar_select %p101, %s8, 1
        %s103 = smul.addr %s102, 3
        %s104 = smul.addr %s103, 8
        %s105 = scalar_lea.vmem %s0, %s104
      $region24: #{conv_block_forward.2} parent=19 // pred_fallthru
        _
    $region20: #{conv_block_forward.2} parent=5 // pred_fallthru
      _
    %p106 = scmp.le.s32.totalorder 1, %s8
    %p107 = scmp.lt.s32.totalorder %s8, 3
    %p108 = pnand %p106, %p107
    %p109 = pneg %p108
    // Predicated region
    $region25: #{conv_block_forward.2} parent=5 // pred_check
      _
    $region26: #{conv_block_forward.2} parent=5 // pred_check_branch
      %111 = sbr.rel (%p108) target = $region28
    $region27: #{conv_block_forward.2} parent=5 // pred_region
      %s112 = ssub.s32 %s8, 1
      %p113 = scmp.lt.s32.totalorder %s13, 1
      %s114 = scalar_select %p113, %s13, 1
      %s115 = smul.addr %s114, 3
      %s116 = smul.addr %s115, 8
      %s117 = scalar_lea.vmem %s0, %s116
      %p118 = pneg %p34
      %p119 = pneg %p31
      %p120 = pneg %p55
      %p121 = pneg %p52
      %p122 = pneg %p76
      %p123 = pneg %p73
      %p124 = scmp.lt.s32.totalorder %s13, 1
      %s125 = scalar_select %p124, %s13, 1
      %s126 = smul.addr %s125, 3
      %s127 = smul.addr %s126, 8
      %s128 = scalar_lea.vmem %s0, %s127
      %p129 = scmp.eq.s32.totalorder %s13, 0
      // Predicated region
      $region29: #{conv_block_forward.2} parent=27 // pred_check
        %p130 = pneg %p129
      $region30: #{conv_block_forward.2} parent=27 // pred_check_branch
        %132 = sbr.rel (%p130) target = $region32
      $region31: #{conv_block_forward.2} parent=27 // pred_region
        %133 = vst [vmem:[#allocation2] sm:$0x3] 0.0
      $region32: #{conv_block_forward.2} parent=27 // pred_fallthru
        _
      %v134 = vld [vmem:[%s128] sm:$0xff]
      %v135 = vld [vmem:[%s128 + $0x8] sm:$0xff]
      %v136 = vld [vmem:[%s128 + $0x10] sm:$0x3]
      %v137 = vld [vmem:[%s1] sm:$0xff]
      %v138 = vld [vmem:[%s1 + $0x8] sm:$0xff]
      %v139 = vld [vmem:[%s1 + $0x10] sm:$0xff]
      %v140 = vld [vmem:[%s1 + $0x18] sm:$0xff]
      %v141 = vld [vmem:[%s1 + $0x20] sm:$0xff]
      %v142 = vld [vmem:[%s1 + $0x28] sm:$0xff]
      %v143 = vld [vmem:[%s1 + $0x30] sm:$0xff]
      %v144 = vld [vmem:[%s1 + $0x38] sm:$0xff]
      %v145 = vld [vmem:[%s1 + $0x40] sm:$0xff]
      %s146 = scalar_lea.vmem %s1, 72
      %v147 = vld [vmem:[%s146] sm:$0xff]
      %v148 = vld [vmem:[%s146 + $0x8] sm:$0xff]
      %v149 = vld [vmem:[%s146 + $0x10] sm:$0xff]
      %v150 = vld [vmem:[%s146 + $0x18] sm:$0xff]
      %v151 = vld [vmem:[%s146 + $0x20] sm:$0xff]
      %v152 = vld [vmem:[%s146 + $0x28] sm:$0xff]
      %v153 = vld [vmem:[%s146 + $0x30] sm:$0xff]
      %v154 = vld [vmem:[%s146 + $0x38] sm:$0xff]
      %v155 = vld [vmem:[%s146 + $0x40] sm:$0xff]
      %vm159 = vcmask 1046528
      %v160 = vrot.slane %v134, 1
      %v161 = vrot.slane %v135, 1
      %v162 = vsel %vm159, %v160, %v161
      %v163 = vrot.slane %v136, 1
      %v164 = vsel %vm159, %v161, %v163
      %vm165 = vcmask 588800
      %v166 = vsel %vm165, %v162, 0
      %v168 = vsel %vm165, %v164, 0
      %170 = vmatprep.subr.mxu0 0.0
      %171 = vmatpush1.msra.mxu0 0.0
      %172 = vmatprep.subr.mxu0 0.0
      %173 = vmatpush1.msra.mxu0 0.0
      %174 = vmatprep.subr.mxu0 0.0
      %175 = vmatpush1.msra.mxu0 0.0
      %176 = vmatprep.subr.mxu0 0.0
      %177 = vmatpush1.msra.mxu0 0.0
      %178 = vmatprep.subr.mxu0 0.0
      %179 = vmatpush1.msra.mxu0 0.0
      %180 = vmatprep.subr.mxu0 0.0
      %181 = vmatpush1.msra.mxu0 0.0
      %182 = vmatprep.subr.mxu0 0.0
      %183 = vmatpush1.msra.mxu0 0.0
      %184 = vmatprep.subr.mxu0 0.0
      %185 = vmatpush1.msra.mxu0 %v155
      %186 = vmatprep.subr.mxu0 0.0
      %187 = vmatpush1.msra.mxu0 %v154
      %188 = vmatprep.subr.mxu0 0.0
      %189 = vmatpush1.msra.mxu0 %v153
      %190 = vmatprep.subr.mxu0 0.0
      %191 = vmatpush1.msra.mxu0 %v152
      %192 = vmatprep.subr.mxu0 0.0
      %193 = vmatpush1.msra.mxu0 %v151
      %194 = vmatprep.subr.mxu0 0.0
      %195 = vmatpush1.msra.mxu0 %v150
      %196 = vmatprep.subr.mxu0 0.0
      %197 = vmatpush1.msra.mxu0 %v149
      %198 = vmatprep.subr.mxu0 0.0
      %199 = vmatpush1.msra.mxu0 %v148
      %200 = vmatprep.subr.mxu0 0.0
      %201 = vmatpush1.msra.mxu0 %v147
      %202 = vmatprep.subr.mxu0 0.0
      %203 = vmatpush2.msra.mxu0 0.0
      %204 = vmatprep.subr.mxu0 0.0
      %205 = vmatpush2.msra.mxu0 0.0
      %206 = vmatprep.subr.mxu0 0.0
      %207 = vmatpush2.msra.mxu0 0.0
      %208 = vmatprep.subr.mxu0 0.0
      %209 = vmatpush2.msra.mxu0 0.0
      %210 = vmatprep.subr.mxu0 0.0
      %211 = vmatpush2.msra.mxu0 0.0
      %212 = vmatprep.subr.mxu0 0.0
      %213 = vmatpush2.msra.mxu0 0.0
      %214 = vmatprep.subr.mxu0 0.0
      %215 = vmatpush2.msra.mxu0 0.0
      %216 = vmatprep.subr.mxu0 0.0
      %217 = vmatpush2.msra.mxu0 0.0
      %218 = vmatprep.subr.mxu0 0.0
      %219 = vmatpush2.msra.mxu0 0.0
      %220 = vmatprep.subr.mxu0 0.0
      %221 = vmatpush2.msra.mxu0 0.0
      %222 = vmatprep.subr.mxu0 0.0
      %223 = vmatpush2.msra.mxu0 0.0
      %224 = vmatprep.subr.mxu0 0.0
      %225 = vmatpush2.msra.mxu0 0.0
      %226 = vmatprep.subr.mxu0 0.0
      %227 = vmatpush2.msra.mxu0 0.0
      %228 = vmatprep.subr.mxu0 0.0
      %229 = vmatpush2.msra.mxu0 0.0
      %230 = vmatprep.subr.mxu0 0.0
      %231 = vmatpush2.msra.mxu0 0.0
      %232 = vmatprep.subr.mxu0 0.0
      %233 = vmatpush2.msra.mxu0 0.0
      %234 = vmatprep.mubr.f32.mxu0 0.0
      %235 = vmatmul.mubr.f32.gmra.mxu0 %v166
      %v236 = vpop.f32.mrf.mxu0
      %v237 = vadd.f32 0.0, %v236
      %v238 = vpop.f32.mrf.mxu0
      %239 = vmatprep.mubr.f32.mxu0 0.0
      %240 = vmatmul.mubr.f32.gmra.mxu0 %v168
      %v241 = vpop.f32.mrf.mxu0
      %v242 = vadd.f32 0.0, %v241
      %v243 = vpop.f32.mrf.mxu0
      %244 = vdwg.mxu0
      %v245 = vsel %vm165, %v134, 0
      %v247 = vsel %vm165, %v135, 0
      %249 = vmatprep.subr.mxu0 0.0
      %250 = vmatpush1.msra.mxu0 0.0
      %251 = vmatprep.subr.mxu0 0.0
      %252 = vmatpush1.msra.mxu0 0.0
      %253 = vmatprep.subr.mxu0 0.0
      %254 = vmatpush1.msra.mxu0 0.0
      %255 = vmatprep.subr.mxu0 0.0
      %256 = vmatpush1.msra.mxu0 0.0
      %257 = vmatprep.subr.mxu0 0.0
      %258 = vmatpush1.msra.mxu0 0.0
      %259 = vmatprep.subr.mxu0 0.0
      %260 = vmatpush1.msra.mxu0 0.0
      %261 = vmatprep.subr.mxu0 0.0
      %262 = vmatpush1.msra.mxu0 0.0
      %263 = vmatprep.subr.mxu0 0.0
      %264 = vmatpush1.msra.mxu0 %v145
      %265 = vmatprep.subr.mxu0 0.0
      %266 = vmatpush1.msra.mxu0 %v144
      %267 = vmatprep.subr.mxu0 0.0
      %268 = vmatpush1.msra.mxu0 %v143
      %269 = vmatprep.subr.mxu0 0.0
      %270 = vmatpush1.msra.mxu0 %v142
      %271 = vmatprep.subr.mxu0 0.0
      %272 = vmatpush1.msra.mxu0 %v141
      %273 = vmatprep.subr.mxu0 0.0
      %274 = vmatpush1.msra.mxu0 %v140
      %275 = vmatprep.subr.mxu0 0.0
      %276 = vmatpush1.msra.mxu0 %v139
      %277 = vmatprep.subr.mxu0 0.0
      %278 = vmatpush1.msra.mxu0 %v138
      %279 = vmatprep.subr.mxu0 0.0
      %280 = vmatpush1.msra.mxu0 %v137
      %281 = vmatprep.subr.mxu0 0.0
      %282 = vmatpush2.msra.mxu0 0.0
      %283 = vmatprep.subr.mxu0 0.0
      %284 = vmatpush2.msra.mxu0 0.0
      %285 = vmatprep.subr.mxu0 0.0
      %286 = vmatpush2.msra.mxu0 0.0
      %287 = vmatprep.subr.mxu0 0.0
      %288 = vmatpush2.msra.mxu0 0.0
      %289 = vmatprep.subr.mxu0 0.0
      %290 = vmatpush2.msra.mxu0 0.0
      %291 = vmatprep.subr.mxu0 0.0
      %292 = vmatpush2.msra.mxu0 0.0
      %293 = vmatprep.subr.mxu0 0.0
      %294 = vmatpush2.msra.mxu0 0.0
      %295 = vmatprep.subr.mxu0 0.0
      %296 = vmatpush2.msra.mxu0 0.0
      %297 = vmatprep.subr.mxu0 0.0
      %298 = vmatpush2.msra.mxu0 0.0
      %299 = vmatprep.subr.mxu0 0.0
      %300 = vmatpush2.msra.mxu0 0.0
      %301 = vmatprep.subr.mxu0 0.0
      %302 = vmatpush2.msra.mxu0 0.0
      %303 = vmatprep.subr.mxu0 0.0
      %304 = vmatpush2.msra.mxu0 0.0
      %305 = vmatprep.subr.mxu0 0.0
      %306 = vmatpush2.msra.mxu0 0.0
      %307 = vmatprep.subr.mxu0 0.0
      %308 = vmatpush2.msra.mxu0 0.0
      %309 = vmatprep.subr.mxu0 0.0
      %310 = vmatpush2.msra.mxu0 0.0
      %311 = vmatprep.subr.mxu0 0.0
      %312 = vmatpush2.msra.mxu0 0.0
      %313 = vmatprep.mubr.f32.mxu0 0.0
      %314 = vmatmul.mubr.f32.gmra.mxu0 %v245
      %v315 = vpop.f32.mrf.mxu0
      %v316 = vadd.f32 %v237, %v315
      %v317 = vpop.f32.mrf.mxu0
      %318 = vmatprep.mubr.f32.mxu0 0.0
      %319 = vmatmul.mubr.f32.gmra.mxu0 %v247
      %v320 = vpop.f32.mrf.mxu0
      %v321 = vadd.f32 %v242, %v320
      %v322 = vpop.f32.mrf.mxu0
      %323 = vdwg.mxu0
      %s324 = scalar_lea.vmem %s1, 144
      %v325 = vld [vmem:[%s324] sm:$0xff]
      %v326 = vld [vmem:[%s324 + $0x8] sm:$0xff]
      %v327 = vld [vmem:[%s324 + $0x10] sm:$0xff]
      %v328 = vld [vmem:[%s324 + $0x18] sm:$0xff]
      %v329 = vld [vmem:[%s324 + $0x20] sm:$0xff]
      %v330 = vld [vmem:[%s324 + $0x28] sm:$0xff]
      %v331 = vld [vmem:[%s324 + $0x30] sm:$0xff]
      %v332 = vld [vmem:[%s324 + $0x38] sm:$0xff]
      %v333 = vld [vmem:[%s324 + $0x40] sm:$0xff]
      %vm334 = vcmask 1045504
      %v335 = vrot.slane %v134, 2
      %v336 = vrot.slane %v135, 2
      %v337 = vsel %vm334, %v335, %v336
      %v338 = vrot.slane %v136, 2
      %v339 = vsel %vm334, %v336, %v338
      %v340 = vsel %vm165, %v337, 0
      %v342 = vsel %vm165, %v339, 0
      %344 = vmatprep.subr.mxu0 0.0
      %345 = vmatpush1.msra.mxu0 0.0
      %346 = vmatprep.subr.mxu0 0.0
      %347 = vmatpush1.msra.mxu0 0.0
      %348 = vmatprep.subr.mxu0 0.0
      %349 = vmatpush1.msra.mxu0 0.0
      %350 = vmatprep.subr.mxu0 0.0
      %351 = vmatpush1.msra.mxu0 0.0
      %352 = vmatprep.subr.mxu0 0.0
      %353 = vmatpush1.msra.mxu0 0.0
      %354 = vmatprep.subr.mxu0 0.0
      %355 = vmatpush1.msra.mxu0 0.0
      %356 = vmatprep.subr.mxu0 0.0
      %357 = vmatpush1.msra.mxu0 0.0
      %358 = vmatprep.subr.mxu0 0.0
      %359 = vmatpush1.msra.mxu0 %v333
      %360 = vmatprep.subr.mxu0 0.0
      %361 = vmatpush1.msra.mxu0 %v332
      %362 = vmatprep.subr.mxu0 0.0
      %363 = vmatpush1.msra.mxu0 %v331
      %364 = vmatprep.subr.mxu0 0.0
      %365 = vmatpush1.msra.mxu0 %v330
      %366 = vmatprep.subr.mxu0 0.0
      %367 = vmatpush1.msra.mxu0 %v329
      %368 = vmatprep.subr.mxu0 0.0
      %369 = vmatpush1.msra.mxu0 %v328
      %370 = vmatprep.subr.mxu0 0.0
      %371 = vmatpush1.msra.mxu0 %v327
      %372 = vmatprep.subr.mxu0 0.0
      %373 = vmatpush1.msra.mxu0 %v326
      %374 = vmatprep.subr.mxu0 0.0
      %375 = vmatpush1.msra.mxu0 %v325
      %376 = vmatprep.subr.mxu0 0.0
      %377 = vmatpush2.msra.mxu0 0.0
      %378 = vmatprep.subr.mxu0 0.0
      %379 = vmatpush2.msra.mxu0 0.0
      %380 = vmatprep.subr.mxu0 0.0
      %381 = vmatpush2.msra.mxu0 0.0
      %382 = vmatprep.subr.mxu0 0.0
      %383 = vmatpush2.msra.mxu0 0.0
      %384 = vmatprep.subr.mxu0 0.0
      %385 = vmatpush2.msra.mxu0 0.0
      %386 = vmatprep.subr.mxu0 0.0
      %387 = vmatpush2.msra.mxu0 0.0
      %388 = vmatprep.subr.mxu0 0.0
      %389 = vmatpush2.msra.mxu0 0.0
      %390 = vmatprep.subr.mxu0 0.0
      %391 = vmatpush2.msra.mxu0 0.0
      %392 = vmatprep.subr.mxu0 0.0
      %393 = vmatpush2.msra.mxu0 0.0
      %394 = vmatprep.subr.mxu0 0.0
      %395 = vmatpush2.msra.mxu0 0.0
      %396 = vmatprep.subr.mxu0 0.0
      %397 = vmatpush2.msra.mxu0 0.0
      %398 = vmatprep.subr.mxu0 0.0
      %399 = vmatpush2.msra.mxu0 0.0
      %400 = vmatprep.subr.mxu0 0.0
      %401 = vmatpush2.msra.mxu0 0.0
      %402 = vmatprep.subr.mxu0 0.0
      %403 = vmatpush2.msra.mxu0 0.0
      %404 = vmatprep.subr.mxu0 0.0
      %405 = vmatpush2.msra.mxu0 0.0
      %406 = vmatprep.subr.mxu0 0.0
      %407 = vmatpush2.msra.mxu0 0.0
      %408 = vmatprep.mubr.f32.mxu0 0.0
      %409 = vmatmul.mubr.f32.gmra.mxu0 %v340
      %v410 = vpop.f32.mrf.mxu0
      %v411 = vadd.f32 0.0, %v410
      %v412 = vpop.f32.mrf.mxu0
      %413 = vmatprep.mubr.f32.mxu0 0.0
      %414 = vmatmul.mubr.f32.gmra.mxu0 %v342
      %v415 = vpop.f32.mrf.mxu0
      %v416 = vadd.f32 0.0, %v415
      %v417 = vpop.f32.mrf.mxu0
      %418 = vdwg.mxu0
      %v419 = vadd.f32 %v316, %v411
      %v420 = vadd.f32 %v321, %v416
      %v421 = vld [vmem:[#allocation2] sm:$0x1]
      %v422 = vadd.f32 %v419, %v420
      %v423 = vrot.slane %v422, 4
      %v424 = vadd.f32 %v422, %v423
      %v425 = vrot.slane %v424, 2
      %v426 = vadd.f32 %v424, %v425
      %v427 = vrot.slane %v426, 1
      %v428 = vadd.f32 %v426, %v427
      %v429 = vadd.f32 %v421, %v428
      %430 = vst [vmem:[#allocation2] sm:$0x1] %v429
      %v431 = vld [vmem:[#allocation2 + $0x1] sm:$0x1]
      %v432 = vmul.f32 %v419, %v419
      %v433 = vmul.f32 %v420, %v420
      %v434 = vadd.f32 %v432, %v433
      %v435 = vrot.slane %v434, 4
      %v436 = vadd.f32 %v434, %v435
      %v437 = vrot.slane %v436, 2
      %v438 = vadd.f32 %v436, %v437
      %v439 = vrot.slane %v438, 1
      %v440 = vadd.f32 %v438, %v439
      %v441 = vadd.f32 %v431, %v440
      %442 = vst [vmem:[#allocation2 + $0x1] sm:$0x1] %v441
      %p443 = scmp.eq.s32.totalorder %s13, 1
      // Predicated region
      $region33: #{conv_block_forward.2} parent=27 // pred_check
        %p444 = pneg %p443
      $region34: #{conv_block_forward.2} parent=27 // pred_check_branch
        %446 = sbr.rel (%p444) target = $region36
      $region35: #{conv_block_forward.2} parent=27 // pred_region
        %v447 = vld [vmem:[#allocation2] sm:$0x3]
        %448 = vst [vmem:[%s2] sm:$0x3] %v447
      $region36: #{conv_block_forward.2} parent=27 // pred_fallthru
        _
      // Predicated region
      $region37: #{conv_block_forward.2} parent=27 // pred_check
        %p449 = pneg %p73
      $region38: #{conv_block_forward.2} parent=27 // pred_check_branch
        %451 = sbr.rel (%p449) target = $region40
      $region39: #{conv_block_forward.2} parent=27 // pred_region
        _
      $region40: #{conv_block_forward.2} parent=27 // pred_fallthru
        _
      // Predicated region
      $region41: #{conv_block_forward.2} parent=27 // pred_check
        %p452 = pneg %p73
      $region42: #{conv_block_forward.2} parent=27 // pred_check_branch
        %454 = sbr.rel (%p452) target = $region44
      $region43: #{conv_block_forward.2} parent=27 // pred_region
        _
      $region44: #{conv_block_forward.2} parent=27 // pred_fallthru
        _
    $region28: #{conv_block_forward.2} parent=5 // pred_fallthru
      _
    %p455 = scmp.le.s32.totalorder 2, %s8
    // Predicated region
    $region45: #{conv_block_forward.2} parent=5 // pred_check
      %p456 = pneg %p455
    $region46: #{conv_block_forward.2} parent=5 // pred_check_branch
      %458 = sbr.rel (%p456) target = $region48
    $region47: #{conv_block_forward.2} parent=5 // pred_region
      %s459 = ssub.s32 %s8, 2
    $region48: #{conv_block_forward.2} parent=5 // pred_fallthru
      _
  $region6: #{conv_block_forward.2} parent=0 // loop_footer
    %s12 = sadd.s32 1, %s8
  $region7: #{conv_block_forward.2} parent=0 // loop_footer_branch
    %7 = sbr.rel target = $region3
  $region8: #{conv_block_forward.2} parent=0 // loop_exit
    _

// kernel: tile.14
$region0: #{tile.14}
  %s0 = inlined_call_operand.vmem [shape: f32[16,8], index: 0, kind: input, shape index: {}]
  %s1 = inlined_call_operand.vmem [shape: f32[1,128], index: 1, kind: output, shape index: {}]
  $region1: #{tile.14} parent=0
    #allocation0 [shape = 'u8[4096]{0}', space=vmem, size = 0x1000, scoped, tag = 'scoped mem for output reshape']
    %v2 = vld [vmem:[%s0] sm:$0x1]
    %vm3 = vcmask 64512
    %4 = vst.msk [vmem:[#allocation0] sm:$0x1] %vm3, %v2
    %s5 = scalar_lea.vmem %s0, 15
    %v6 = vld [vmem:[%s5] sm:$0x1]
    %7 = vrot.lane.b32.xlu0 %v6, 120
    %v8 = vpop.permute.xlu0 %7
    %vm9 = vcmask 1048512
    %10 = vst.msk [vmem:[#allocation0] sm:$0x1] %vm9, %v8
    %s11 = scalar_lea.vmem %s0, 14
    %v12 = vld [vmem:[%s11] sm:$0x1]
    %13 = vrot.lane.b32.xlu0 %v12, 112
    %v14 = vpop.permute.xlu0 %13
    %vm15 = vcmask 982912
    %16 = vst.msk [vmem:[#allocation0] sm:$0x1] %vm15, %v14
    %s17 = scalar_lea.vmem %s0, 13
    %v18 = vld [vmem:[%s17] sm:$0x1]
    %19 = vrot.lane.b32.xlu0 %v18, 104
    %v20 = vpop.permute.xlu0 %19
    %vm21 = vcmask 917312
    %22 = vst.msk [vmem:[#allocation0] sm:$0x1] %vm21, %v20
    %s23 = scalar_lea.vmem %s0, 12
    %v24 = vld [vmem:[%s23] sm:$0x1]
    %25 = vrot.lane.b32.xlu0 %v24, 96
    %v26 = vpop.permute.xlu0 %25
    %vm27 = vcmask 851712
    %28 = vst.msk [vmem:[#allocation0] sm:$0x1] %vm27, %v26
    %s29 = scalar_lea.vmem %s0, 11
    %v30 = vld [vmem:[%s29] sm:$0x1]
    %31 = vrot.lane.b32.xlu0 %v30, 88
    %v32 = vpop.permute.xlu0 %31
    %vm33 = vcmask 786112
    %34 = vst.msk [vmem:[#allocation0] sm:$0x1] %vm33, %v32
    %s35 = scalar_lea.vmem %s0, 10
    %v36 = vld [vmem:[%s35] sm:$0x1]
    %37 = vrot.lane.b32.xlu0 %v36, 80
    %v38 = vpop.permute.xlu0 %37
    %vm39 = vcmask 720512
    %40 = vst.msk [vmem:[#allocation0] sm:$0x1] %vm39, %v38
    %s41 = scalar_lea.vmem %s0, 9
    %v42 = vld [vmem:[%s41] sm:$0x1]
    %43 = vrot.lane.b32.xlu0 %v42, 72
    %v44 = vpop.permute.xlu0 %43
    %vm45 = vcmask 654912
    %46 = vst.msk [vmem:[#allocation0] sm:$0x1] %vm45, %v44
    %s47 = scalar_lea.vmem %s0, 8
    %v48 = vld [vmem:[%s47] sm:$0x1]
    %49 = vrot.lane.b32.xlu0 %v48, 64
    %v50 = vpop.permute.xlu0 %49
    %vm51 = vcmask 589312
    %52 = vst.msk [vmem:[#allocation0] sm:$0x1] %vm51, %v50
    %s53 = scalar_lea.vmem %s0, 7
    %v54 = vld [vmem:[%s53] sm:$0x1]
    %55 = vrot.lane.b32.xlu0 %v54, 56
    %v56 = vpop.permute.xlu0 %55
    %vm57 = vcmask 523712
    %58 = vst.msk [vmem:[#allocation0] sm:$0x1] %vm57, %v56
    %s59 = scalar_lea.vmem %s0, 6
    %v60 = vld [vmem:[%s59] sm:$0x1]
    %61 = vrot.lane.b32.xlu0 %v60, 48
    %v62 = vpop.permute.xlu0 %61
    %vm63 = vcmask 458112
    %64 = vst.msk [vmem:[#allocation0] sm:$0x1] %vm63, %v62
    %s65 = scalar_lea.vmem %s0, 5
    %v66 = vld [vmem:[%s65] sm:$0x1]
    %67 = vrot.lane.b32.xlu0 %v66, 40
    %v68 = vpop.permute.xlu0 %67
    %vm69 = vcmask 392512
    %70 = vst.msk [vmem:[#allocation0] sm:$0x1] %vm69, %v68
    %s71 = scalar_lea.vmem %s0, 4
    %v72 = vld [vmem:[%s71] sm:$0x1]
    %73 = vrot.lane.b32.xlu0 %v72, 32
    %v74 = vpop.permute.xlu0 %73
    %vm75 = vcmask 326912
    %76 = vst.msk [vmem:[#allocation0] sm:$0x1] %vm75, %v74
    %s77 = scalar_lea.vmem %s0, 3
    %v78 = vld [vmem:[%s77] sm:$0x1]
    %79 = vrot.lane.b32.xlu0 %v78, 24
    %v80 = vpop.permute.xlu0 %79
    %vm81 = vcmask 261312
    %82 = vst.msk [vmem:[#allocation0] sm:$0x1] %vm81, %v80
    %s83 = scalar_lea.vmem %s0, 2
    %v84 = vld [vmem:[%s83] sm:$0x1]
    %85 = vrot.lane.b32.xlu0 %v84, 16
    %v86 = vpop.permute.xlu0 %85
    %vm87 = vcmask 195712
    %88 = vst.msk [vmem:[#allocation0] sm:$0x1] %vm87, %v86
    %s89 = scalar_lea.vmem %s0, 1
    %v90 = vld [vmem:[%s89] sm:$0x1]
    %91 = vrot.lane.b32.xlu0 %v90, 8
    %v92 = vpop.permute.xlu0 %91
    %vm93 = vcmask 130112
    %94 = vst.msk [vmem:[#allocation0] sm:$0x1] %vm93, %v92
    %s96 = sshll.u32 1, 1
    %s97 = ssub.s32 %s96, 1
    %v99 = vld [vmem:[#allocation0] sm:%s97]
    %s100 = sshll.u32 1, 1
    %s101 = ssub.s32 %s100, 1
    %102 = vst [vmem:[%s1] sm:%s101] %v99

// kernel: conv_block_forward.3
$region0: #{conv_block_forward.3}
  #allocation0 [shape = 'u32[]', space=smem, size = 0x4, offset = 0x4, fixed_abs, tag = 'smem constant byte address 0x4 - core index']
  #allocation1 [shape = 'u32[144,128]{1,0:T(1,128)}', space=vmem, size = 0x12000, scoped, tag = 'internal scratch']
  %s0 = inlined_call_operand.vmem [shape: f32[2,18,72], index: 0, kind: input, shape index: {}]
  %s1 = inlined_call_operand.vmem [shape: f32[3,72,128], index: 1, kind: input, shape index: {}]
  %s2 = inlined_call_operand.vmem [shape: f32[1,128], index: 2, kind: input, shape index: {}]
  %s3 = inlined_call_operand.vmem [shape: f32[1,128], index: 3, kind: input, shape index: {}]
  %s4 = inlined_call_operand.vmem [shape: f32[32,128], index: 4, kind: output, shape index: {}]
  %s5 = sld [smem:[#allocation0]]
  $region49: #{conv_block_forward.3} parent=0
    _
  %s7 = ssub.s32 1, %s5
  %s8 = scalar_select 0, %s7, %s5
  loop: start=0, step=1, limit=4
  $region2: #{conv_block_forward.3} parent=0 // loop_pre_header
    _
  $region3: #{conv_block_forward.3} parent=0 // loop_header
    %s10 = sphi 0, %s14
    %p11 = scmp.ge.s32.totalorder %s10, 4
    %s20 = sphi 0, %s22
    %s23 = sphi 0, %s20
    %s24 = sphi 0, %s23
    %s40 = sphi 0, %s24
    %s44 = sphi 0, %s44
    %s46 = sphi 0, %s44
    %s47 = sphi 0, %s46
    %s61 = sphi 0, %s47
    %s65 = sphi 0, %s65
    %s67 = sphi 0, %s65
    %s68 = sphi 0, %s67
    %s82 = sphi 0, %s68
    %s86 = sphi 0, %s86
    %s88 = sphi 0, %s86
    %s89 = sphi 0, %s88
    %s103 = sphi 0, %s89
    %s109 = sphi 0, %s111
    %s112 = sphi 0, %s109
    %s113 = sphi 0, %s112
    %s129 = sphi 0, %s113
  $region4: #{conv_block_forward.3} parent=0 // loop_header_branch
    %13 = sbr.rel (%p11) target = $region8
  $region5: #{conv_block_forward.3} parent=0 // loop_body
    %s15 = ssub.s32 %s10, 1
    %s16 = ssub.s32 %s10, 2
    %s17 = sadd.s32 %s10, 1
    %s18 = ssub.s32 %s10, %s17
    %p19 = scmp.eq.s32.totalorder %s18, 0
    %s21 = sadd.s32 %s20, 1
    %s22 = scalar_select %p19, %s20, %s21
    %p25 = pneg %p19
    %p26 = scmp.eq.s32.totalorder %s10, 1
    %p27 = por %p25, %p26
    %p28 = scmp.ne.s32.totalorder %s20, %s23
    %p29 = scmp.eq.s32.totalorder %s10, 0
    %p30 = por %p28, %p29
    %p31 = scmp.ne.s32.totalorder %s20, %s23
    %p32 = scmp.eq.s32.totalorder %s15, 1
    %p33 = por %p31, %p32
    %p34 = scmp.ne.s32.totalorder %s23, %s24
    %p35 = scmp.eq.s32.totalorder %s15, 0
    %p36 = por %p34, %p35
    %p37 = scmp.ne.s32.totalorder %s23, %s24
    %p38 = scmp.eq.s32.totalorder %s16, 1
    %p39 = por %p37, %p38
    %p41 = scmp.ne.s32.totalorder %s24, %s40
    %p42 = scmp.eq.s32.totalorder %s16, 0
    %p43 = por %p41, %p42
    %s45 = sadd.s32 %s44, 1
    %p48 = scmp.eq.s32.totalorder %s10, 1
    %p49 = scmp.ne.s32.totalorder %s44, %s46
    %p50 = scmp.eq.s32.totalorder %s10, 0
    %p51 = por %p49, %p50
    %p52 = scmp.ne.s32.totalorder %s44, %s46
    %p53 = scmp.eq.s32.totalorder %s15, 1
    %p54 = por %p52, %p53
    %p55 = scmp.ne.s32.totalorder %s46, %s47
    %p56 = scmp.eq.s32.totalorder %s15, 0
    %p57 = por %p55, %p56
    %p58 = scmp.ne.s32.totalorder %s46, %s47
    %p59 = scmp.eq.s32.totalorder %s16, 1
    %p60 = por %p58, %p59
    %p62 = scmp.ne.s32.totalorder %s47, %s61
    %p63 = scmp.eq.s32.totalorder %s16, 0
    %p64 = por %p62, %p63
    %s66 = sadd.s32 %s65, 1
    %p69 = scmp.eq.s32.totalorder %s10, 1
    %p70 = scmp.ne.s32.totalorder %s65, %s67
    %p71 = scmp.eq.s32.totalorder %s10, 0
    %p72 = por %p70, %p71
    %p73 = scmp.ne.s32.totalorder %s65, %s67
    %p74 = scmp.eq.s32.totalorder %s15, 1
    %p75 = por %p73, %p74
    %p76 = scmp.ne.s32.totalorder %s67, %s68
    %p77 = scmp.eq.s32.totalorder %s15, 0
    %p78 = por %p76, %p77
    %p79 = scmp.ne.s32.totalorder %s67, %s68
    %p80 = scmp.eq.s32.totalorder %s16, 1
    %p81 = por %p79, %p80
    %p83 = scmp.ne.s32.totalorder %s68, %s82
    %p84 = scmp.eq.s32.totalorder %s16, 0
    %p85 = por %p83, %p84
    %s87 = sadd.s32 %s86, 1
    %p90 = scmp.eq.s32.totalorder %s10, 1
    %p91 = scmp.ne.s32.totalorder %s86, %s88
    %p92 = scmp.eq.s32.totalorder %s10, 0
    %p93 = por %p91, %p92
    %p94 = scmp.ne.s32.totalorder %s86, %s88
    %p95 = scmp.eq.s32.totalorder %s15, 1
    %p96 = por %p94, %p95
    %p97 = scmp.ne.s32.totalorder %s88, %s89
    %p98 = scmp.eq.s32.totalorder %s15, 0
    %p99 = por %p97, %p98
    %p100 = scmp.ne.s32.totalorder %s88, %s89
    %p101 = scmp.eq.s32.totalorder %s16, 1
    %p102 = por %p100, %p101
    %p104 = scmp.ne.s32.totalorder %s89, %s103
    %p105 = scmp.eq.s32.totalorder %s16, 0
    %p106 = por %p104, %p105
    %s107 = ssub.s32 %s10, %s17
    %p108 = scmp.eq.s32.totalorder %s107, 0
    %s110 = sadd.s32 %s109, 1
    %s111 = scalar_select %p108, %s109, %s110
    %p114 = pneg %p108
    %p115 = scmp.eq.s32.totalorder %s10, 1
    %p116 = por %p114, %p115
    %p117 = scmp.ne.s32.totalorder %s109, %s112
    %p118 = scmp.eq.s32.totalorder %s10, 0
    %p119 = por %p117, %p118
    %p120 = scmp.ne.s32.totalorder %s109, %s112
    %p121 = scmp.eq.s32.totalorder %s15, 1
    %p122 = por %p120, %p121
    %p123 = scmp.ne.s32.totalorder %s112, %s113
    %p124 = scmp.eq.s32.totalorder %s15, 0
    %p125 = por %p123, %p124
    %p126 = scmp.ne.s32.totalorder %s112, %s113
    %p127 = scmp.eq.s32.totalorder %s16, 1
    %p128 = por %p126, %p127
    %p130 = scmp.ne.s32.totalorder %s113, %s129
    %p131 = scmp.eq.s32.totalorder %s16, 0
    %p132 = por %p130, %p131
    %p133 = scmp.le.s32.totalorder 1, %s10
    %p134 = scmp.lt.s32.totalorder %s10, 3
    %p135 = pnand %p133, %p134
    %p136 = pneg %p135
    // Predicated region
    $region9: #{conv_block_forward.3} parent=5 // pred_check
      _
    $region10: #{conv_block_forward.3} parent=5 // pred_check_branch
      %138 = sbr.rel (%p135) target = $region12
    $region11: #{conv_block_forward.3} parent=5 // pred_region
      %s139 = ssub.s32 %s10, 1
      // Predicated region
      $region13: #{conv_block_forward.3} parent=11 // pred_check
        %p140 = pneg %p57
      $region14: #{conv_block_forward.3} parent=11 // pred_check_branch
        %142 = sbr.rel (%p140) target = $region16
      $region15: #{conv_block_forward.3} parent=11 // pred_region
        _
      $region16: #{conv_block_forward.3} parent=11 // pred_fallthru
        _
      // Predicated region
      $region17: #{conv_block_forward.3} parent=11 // pred_check
        %p143 = pneg %p78
      $region18: #{conv_block_forward.3} parent=11 // pred_check_branch
        %145 = sbr.rel (%p143) target = $region20
      $region19: #{conv_block_forward.3} parent=11 // pred_region
        _
      $region20: #{conv_block_forward.3} parent=11 // pred_fallthru
        _
      // Predicated region
      $region21: #{conv_block_forward.3} parent=11 // pred_check
        %p146 = pneg %p99
      $region22: #{conv_block_forward.3} parent=11 // pred_check_branch
        %148 = sbr.rel (%p146) target = $region24
      $region23: #{conv_block_forward.3} parent=11 // pred_region
        _
      $region24: #{conv_block_forward.3} parent=11 // pred_fallthru
        _
    $region12: #{conv_block_forward.3} parent=5 // pred_fallthru
      _
    %p149 = scmp.lt.s32.totalorder %s10, 2
    // Predicated region
    $region25: #{conv_block_forward.3} parent=5 // pred_check
      %p150 = pneg %p149
    $region26: #{conv_block_forward.3} parent=5 // pred_check_branch
      %152 = sbr.rel (%p150) target = $region28
    $region27: #{conv_block_forward.3} parent=5 // pred_region
      // Predicated region
      $region29: #{conv_block_forward.3} parent=27 // pred_check
        %p153 = pneg %p30
      $region30: #{conv_block_forward.3} parent=27 // pred_check_branch
        %155 = sbr.rel (%p153) target = $region32
      $region31: #{conv_block_forward.3} parent=27 // pred_region
        %p156 = scmp.lt.s32.totalorder %s10, 1
        %s157 = scalar_select %p156, %s10, 1
        %s158 = smul.addr %s157, 3
        %s159 = smul.addr %s158, 8
        %s160 = scalar_lea.vmem %s0, %s159
      $region32: #{conv_block_forward.3} parent=27 // pred_fallthru
        _
    $region28: #{conv_block_forward.3} parent=5 // pred_fallthru
      _
    %p161 = scmp.le.s32.totalorder 1, %s10
    %p162 = scmp.lt.s32.totalorder %s10, 3
    %p163 = pnand %p161, %p162
    %p164 = pneg %p163
    // Predicated region
    $region33: #{conv_block_forward.3} parent=5 // pred_check
      _
    $region34: #{conv_block_forward.3} parent=5 // pred_check_branch
      %166 = sbr.rel (%p163) target = $region36
    $region35: #{conv_block_forward.3} parent=5 // pred_region
      %s167 = ssub.s32 %s10, 1
      %p168 = scmp.lt.s32.totalorder %s15, 1
      %s169 = scalar_select %p168, %s15, 1
      %s170 = smul.addr %s169, 3
      %s171 = smul.addr %s170, 8
      %s172 = scalar_lea.vmem %s0, %s171
      %p173 = pneg %p36
      %p174 = pneg %p33
      %p175 = pneg %p57
      %p176 = pneg %p54
      %p177 = pneg %p78
      %p178 = pneg %p75
      %p179 = pneg %p99
      %p180 = pneg %p96
      %p181 = pneg %p125
      %p182 = pneg %p122
      %s183 = smul.u32 2, %s15
      %p184 = scmp.lt.s32.totalorder %s183, 3
      %s185 = scalar_select %p184, %s183, 3
      %s186 = smul.addr %s185, 8
      %s187 = scalar_lea.vmem %s4, %s186
      %p188 = scmp.lt.s32.totalorder %s15, 1
      %s189 = scalar_select %p188, %s15, 1
      %s190 = smul.addr %s189, 3
      %s191 = smul.addr %s190, 8
      %s192 = scalar_lea.vmem %s0, %s191
      %s193 = smul.u32 2, %s15
      %p194 = scmp.lt.s32.totalorder %s193, 3
      %s195 = scalar_select %p194, %s193, 3
      %s196 = smul.addr %s195, 8
      %s197 = scalar_lea.vmem %s4, %s196
      %s198 = smul.u32 2, %s15
      %v199 = vld [vmem:[%s192] sm:$0xff]
      %v200 = vld [vmem:[%s192 + $0x8] sm:$0xff]
      %v201 = vld [vmem:[%s192 + $0x10] sm:$0x3]
      %v202 = vld [vmem:[%s1] sm:$0xff]
      %v203 = vld [vmem:[%s1 + $0x8] sm:$0xff]
      %v204 = vld [vmem:[%s1 + $0x10] sm:$0xff]
      %v205 = vld [vmem:[%s1 + $0x18] sm:$0xff]
      %v206 = vld [vmem:[%s1 + $0x20] sm:$0xff]
      %v207 = vld [vmem:[%s1 + $0x28] sm:$0xff]
      %v208 = vld [vmem:[%s1 + $0x30] sm:$0xff]
      %v209 = vld [vmem:[%s1 + $0x38] sm:$0xff]
      %v210 = vld [vmem:[%s1 + $0x40] sm:$0xff]
      %s211 = scalar_lea.vmem %s1, 72
      %v212 = vld [vmem:[%s211] sm:$0xff]
      %v213 = vld [vmem:[%s211 + $0x8] sm:$0xff]
      %v214 = vld [vmem:[%s211 + $0x10] sm:$0xff]
      %v215 = vld [vmem:[%s211 + $0x18] sm:$0xff]
      %v216 = vld [vmem:[%s211 + $0x20] sm:$0xff]
      %v217 = vld [vmem:[%s211 + $0x28] sm:$0xff]
      %v218 = vld [vmem:[%s211 + $0x30] sm:$0xff]
      %v219 = vld [vmem:[%s211 + $0x38] sm:$0xff]
      %v220 = vld [vmem:[%s211 + $0x40] sm:$0xff]
      %vm224 = vcmask 1046528
      %v225 = vrot.slane %v199, 1
      %v226 = vrot.slane %v200, 1
      %v227 = vsel %vm224, %v225, %v226
      %v228 = vrot.slane %v201, 1
      %v229 = vsel %vm224, %v226, %v228
      %vm230 = vcmask 588800
      %v231 = vsel %vm230, %v227, 0
      %v233 = vsel %vm230, %v229, 0
      %235 = vmatprep.subr.mxu0 0.0
      %236 = vmatpush1.msra.mxu0 0.0
      %237 = vmatprep.subr.mxu0 0.0
      %238 = vmatpush1.msra.mxu0 0.0
      %239 = vmatprep.subr.mxu0 0.0
      %240 = vmatpush1.msra.mxu0 0.0
      %241 = vmatprep.subr.mxu0 0.0
      %242 = vmatpush1.msra.mxu0 0.0
      %243 = vmatprep.subr.mxu0 0.0
      %244 = vmatpush1.msra.mxu0 0.0
      %245 = vmatprep.subr.mxu0 0.0
      %246 = vmatpush1.msra.mxu0 0.0
      %247 = vmatprep.subr.mxu0 0.0
      %248 = vmatpush1.msra.mxu0 0.0
      %249 = vmatprep.subr.mxu0 0.0
      %250 = vmatpush1.msra.mxu0 %v220
      %251 = vmatprep.subr.mxu0 0.0
      %252 = vmatpush1.msra.mxu0 %v219
      %253 = vmatprep.subr.mxu0 0.0
      %254 = vmatpush1.msra.mxu0 %v218
      %255 = vmatprep.subr.mxu0 0.0
      %256 = vmatpush1.msra.mxu0 %v217
      %257 = vmatprep.subr.mxu0 0.0
      %258 = vmatpush1.msra.mxu0 %v216
      %259 = vmatprep.subr.mxu0 0.0
      %260 = vmatpush1.msra.mxu0 %v215
      %261 = vmatprep.subr.mxu0 0.0
      %262 = vmatpush1.msra.mxu0 %v214
      %263 = vmatprep.subr.mxu0 0.0
      %264 = vmatpush1.msra.mxu0 %v213
      %265 = vmatprep.subr.mxu0 0.0
      %266 = vmatpush1.msra.mxu0 %v212
      %267 = vmatprep.subr.mxu0 0.0
      %268 = vmatpush2.msra.mxu0 0.0
      %269 = vmatprep.subr.mxu0 0.0
      %270 = vmatpush2.msra.mxu0 0.0
      %271 = vmatprep.subr.mxu0 0.0
      %272 = vmatpush2.msra.mxu0 0.0
      %273 = vmatprep.subr.mxu0 0.0
      %274 = vmatpush2.msra.mxu0 0.0
      %275 = vmatprep.subr.mxu0 0.0
      %276 = vmatpush2.msra.mxu0 0.0
      %277 = vmatprep.subr.mxu0 0.0
      %278 = vmatpush2.msra.mxu0 0.0
      %279 = vmatprep.subr.mxu0 0.0
      %280 = vmatpush2.msra.mxu0 0.0
      %281 = vmatprep.subr.mxu0 0.0
      %282 = vmatpush2.msra.mxu0 0.0
      %283 = vmatprep.subr.mxu0 0.0
      %284 = vmatpush2.msra.mxu0 0.0
      %285 = vmatprep.subr.mxu0 0.0
      %286 = vmatpush2.msra.mxu0 0.0
      %287 = vmatprep.subr.mxu0 0.0
      %288 = vmatpush2.msra.mxu0 0.0
      %289 = vmatprep.subr.mxu0 0.0
      %290 = vmatpush2.msra.mxu0 0.0
      %291 = vmatprep.subr.mxu0 0.0
      %292 = vmatpush2.msra.mxu0 0.0
      %293 = vmatprep.subr.mxu0 0.0
      %294 = vmatpush2.msra.mxu0 0.0
      %295 = vmatprep.subr.mxu0 0.0
      %296 = vmatpush2.msra.mxu0 0.0
      %297 = vmatprep.subr.mxu0 0.0
      %298 = vmatpush2.msra.mxu0 0.0
      %299 = vmatprep.mubr.f32.mxu0 0.0
      %300 = vmatmul.mubr.f32.gmra.mxu0 %v231
      %v301 = vpop.f32.mrf.mxu0
      %v302 = vadd.f32 0.0, %v301
      %v303 = vpop.f32.mrf.mxu0
      %304 = vmatprep.mubr.f32.mxu0 0.0
      %305 = vmatmul.mubr.f32.gmra.mxu0 %v233
      %v306 = vpop.f32.mrf.mxu0
      %v307 = vadd.f32 0.0, %v306
      %v308 = vpop.f32.mrf.mxu0
      %309 = vdwg.mxu0
      %v310 = vsel %vm230, %v199, 0
      %v312 = vsel %vm230, %v200, 0
      %314 = vmatprep.subr.mxu0 0.0
      %315 = vmatpush1.msra.mxu0 0.0
      %316 = vmatprep.subr.mxu0 0.0
      %317 = vmatpush1.msra.mxu0 0.0
      %318 = vmatprep.subr.mxu0 0.0
      %319 = vmatpush1.msra.mxu0 0.0
      %320 = vmatprep.subr.mxu0 0.0
      %321 = vmatpush1.msra.mxu0 0.0
      %322 = vmatprep.subr.mxu0 0.0
      %323 = vmatpush1.msra.mxu0 0.0
      %324 = vmatprep.subr.mxu0 0.0
      %325 = vmatpush1.msra.mxu0 0.0
      %326 = vmatprep.subr.mxu0 0.0
      %327 = vmatpush1.msra.mxu0 0.0
      %328 = vmatprep.subr.mxu0 0.0
      %329 = vmatpush1.msra.mxu0 %v210
      %330 = vmatprep.subr.mxu0 0.0
      %331 = vmatpush1.msra.mxu0 %v209
      %332 = vmatprep.subr.mxu0 0.0
      %333 = vmatpush1.msra.mxu0 %v208
      %334 = vmatprep.subr.mxu0 0.0
      %335 = vmatpush1.msra.mxu0 %v207
      %336 = vmatprep.subr.mxu0 0.0
      %337 = vmatpush1.msra.mxu0 %v206
      %338 = vmatprep.subr.mxu0 0.0
      %339 = vmatpush1.msra.mxu0 %v205
      %340 = vmatprep.subr.mxu0 0.0
      %341 = vmatpush1.msra.mxu0 %v204
      %342 = vmatprep.subr.mxu0 0.0
      %343 = vmatpush1.msra.mxu0 %v203
      %344 = vmatprep.subr.mxu0 0.0
      %345 = vmatpush1.msra.mxu0 %v202
      %346 = vmatprep.subr.mxu0 0.0
      %347 = vmatpush2.msra.mxu0 0.0
      %348 = vmatprep.subr.mxu0 0.0
      %349 = vmatpush2.msra.mxu0 0.0
      %350 = vmatprep.subr.mxu0 0.0
      %351 = vmatpush2.msra.mxu0 0.0
      %352 = vmatprep.subr.mxu0 0.0
      %353 = vmatpush2.msra.mxu0 0.0
      %354 = vmatprep.subr.mxu0 0.0
      %355 = vmatpush2.msra.mxu0 0.0
      %356 = vmatprep.subr.mxu0 0.0
      %357 = vmatpush2.msra.mxu0 0.0
      %358 = vmatprep.subr.mxu0 0.0
      %359 = vmatpush2.msra.mxu0 0.0
      %360 = vmatprep.subr.mxu0 0.0
      %361 = vmatpush2.msra.mxu0 0.0
      %362 = vmatprep.subr.mxu0 0.0
      %363 = vmatpush2.msra.mxu0 0.0
      %364 = vmatprep.subr.mxu0 0.0
      %365 = vmatpush2.msra.mxu0 0.0
      %366 = vmatprep.subr.mxu0 0.0
      %367 = vmatpush2.msra.mxu0 0.0
      %368 = vmatprep.subr.mxu0 0.0
      %369 = vmatpush2.msra.mxu0 0.0
      %370 = vmatprep.subr.mxu0 0.0
      %371 = vmatpush2.msra.mxu0 0.0
      %372 = vmatprep.subr.mxu0 0.0
      %373 = vmatpush2.msra.mxu0 0.0
      %374 = vmatprep.subr.mxu0 0.0
      %375 = vmatpush2.msra.mxu0 0.0
      %376 = vmatprep.subr.mxu0 0.0
      %377 = vmatpush2.msra.mxu0 0.0
      %378 = vmatprep.mubr.f32.mxu0 0.0
      %379 = vmatmul.mubr.f32.gmra.mxu0 %v310
      %v380 = vpop.f32.mrf.mxu0
      %v381 = vadd.f32 %v302, %v380
      %v382 = vpop.f32.mrf.mxu0
      %383 = vmatprep.mubr.f32.mxu0 0.0
      %384 = vmatmul.mubr.f32.gmra.mxu0 %v312
      %v385 = vpop.f32.mrf.mxu0
      %v386 = vadd.f32 %v307, %v385
      %v387 = vpop.f32.mrf.mxu0
      %388 = vdwg.mxu0
      %s389 = scalar_lea.vmem %s1, 144
      %v390 = vld [vmem:[%s389] sm:$0xff]
      %v391 = vld [vmem:[%s389 + $0x8] sm:$0xff]
      %v392 = vld [vmem:[%s389 + $0x10] sm:$0xff]
      %v393 = vld [vmem:[%s389 + $0x18] sm:$0xff]
      %v394 = vld [vmem:[%s389 + $0x20] sm:$0xff]
      %v395 = vld [vmem:[%s389 + $0x28] sm:$0xff]
      %v396 = vld [vmem:[%s389 + $0x30] sm:$0xff]
      %v397 = vld [vmem:[%s389 + $0x38] sm:$0xff]
      %v398 = vld [vmem:[%s389 + $0x40] sm:$0xff]
      %vm399 = vcmask 1045504
      %v400 = vrot.slane %v199, 2
      %v401 = vrot.slane %v200, 2
      %v402 = vsel %vm399, %v400, %v401
      %v403 = vrot.slane %v201, 2
      %v404 = vsel %vm399, %v401, %v403
      %v405 = vsel %vm230, %v402, 0
      %v407 = vsel %vm230, %v404, 0
      %409 = vmatprep.subr.mxu0 0.0
      %410 = vmatpush1.msra.mxu0 0.0
      %411 = vmatprep.subr.mxu0 0.0
      %412 = vmatpush1.msra.mxu0 0.0
      %413 = vmatprep.subr.mxu0 0.0
      %414 = vmatpush1.msra.mxu0 0.0
      %415 = vmatprep.subr.mxu0 0.0
      %416 = vmatpush1.msra.mxu0 0.0
      %417 = vmatprep.subr.mxu0 0.0
      %418 = vmatpush1.msra.mxu0 0.0
      %419 = vmatprep.subr.mxu0 0.0
      %420 = vmatpush1.msra.mxu0 0.0
      %421 = vmatprep.subr.mxu0 0.0
      %422 = vmatpush1.msra.mxu0 0.0
      %423 = vmatprep.subr.mxu0 0.0
      %424 = vmatpush1.msra.mxu0 %v398
      %425 = vmatprep.subr.mxu0 0.0
      %426 = vmatpush1.msra.mxu0 %v397
      %427 = vmatprep.subr.mxu0 0.0
      %428 = vmatpush1.msra.mxu0 %v396
      %429 = vmatprep.subr.mxu0 0.0
      %430 = vmatpush1.msra.mxu0 %v395
      %431 = vmatprep.subr.mxu0 0.0
      %432 = vmatpush1.msra.mxu0 %v394
      %433 = vmatprep.subr.mxu0 0.0
      %434 = vmatpush1.msra.mxu0 %v393
      %435 = vmatprep.subr.mxu0 0.0
      %436 = vmatpush1.msra.mxu0 %v392
      %437 = vmatprep.subr.mxu0 0.0
      %438 = vmatpush1.msra.mxu0 %v391
      %439 = vmatprep.subr.mxu0 0.0
      %440 = vmatpush1.msra.mxu0 %v390
      %441 = vmatprep.subr.mxu0 0.0
      %442 = vmatpush2.msra.mxu0 0.0
      %443 = vmatprep.subr.mxu0 0.0
      %444 = vmatpush2.msra.mxu0 0.0
      %445 = vmatprep.subr.mxu0 0.0
      %446 = vmatpush2.msra.mxu0 0.0
      %447 = vmatprep.subr.mxu0 0.0
      %448 = vmatpush2.msra.mxu0 0.0
      %449 = vmatprep.subr.mxu0 0.0
      %450 = vmatpush2.msra.mxu0 0.0
      %451 = vmatprep.subr.mxu0 0.0
      %452 = vmatpush2.msra.mxu0 0.0
      %453 = vmatprep.subr.mxu0 0.0
      %454 = vmatpush2.msra.mxu0 0.0
      %455 = vmatprep.subr.mxu0 0.0
      %456 = vmatpush2.msra.mxu0 0.0
      %457 = vmatprep.subr.mxu0 0.0
      %458 = vmatpush2.msra.mxu0 0.0
      %459 = vmatprep.subr.mxu0 0.0
      %460 = vmatpush2.msra.mxu0 0.0
      %461 = vmatprep.subr.mxu0 0.0
      %462 = vmatpush2.msra.mxu0 0.0
      %463 = vmatprep.subr.mxu0 0.0
      %464 = vmatpush2.msra.mxu0 0.0
      %465 = vmatprep.subr.mxu0 0.0
      %466 = vmatpush2.msra.mxu0 0.0
      %467 = vmatprep.subr.mxu0 0.0
      %468 = vmatpush2.msra.mxu0 0.0
      %469 = vmatprep.subr.mxu0 0.0
      %470 = vmatpush2.msra.mxu0 0.0
      %471 = vmatprep.subr.mxu0 0.0
      %472 = vmatpush2.msra.mxu0 0.0
      %473 = vmatprep.mubr.f32.mxu0 0.0
      %474 = vmatmul.mubr.f32.gmra.mxu0 %v405
      %v475 = vpop.f32.mrf.mxu0
      %v476 = vadd.f32 0.0, %v475
      %v477 = vpop.f32.mrf.mxu0
      %478 = vmatprep.mubr.f32.mxu0 0.0
      %479 = vmatmul.mubr.f32.gmra.mxu0 %v407
      %v480 = vpop.f32.mrf.mxu0
      %v481 = vadd.f32 0.0, %v480
      %v482 = vpop.f32.mrf.mxu0
      %483 = vdwg.mxu0
      %v484 = vadd.f32 %v381, %v476
      %v485 = vadd.f32 %v386, %v481
      %v486 = vld [vmem:[%s2] sm:$0x1]
      %v488 = vlaneseq
      %v489 = vshrl.u32 %v488, 7
      %v490 = vsub.s32 0, %v489
      %v491 = vrot.slane %v486, %v490
      %v493 = vmul.f32 %v484, %v491
      %v494 = vmul.f32 %v485, %v491
      %v495 = vld [vmem:[%s3] sm:$0x1]
      %v497 = vlaneseq
      %v498 = vshrl.u32 %v497, 7
      %v499 = vsub.s32 0, %v498
      %v500 = vrot.slane %v495, %v499
      %v502 = vadd.f32 %v493, %v500
      %v503 = vadd.f32 %v494, %v500
      %v504 = vmax.f32 %v502, 0.0
      %v505 = vmax.f32 %v503, 0.0
      %506 = vst [vmem:[%s197] sm:$0xff] %v504
      %507 = vst [vmem:[%s197 + $0x8] sm:$0xff] %v505
      %s508 = smul.u32 2, %s15
      %p509 = scmp.lt.s32.totalorder %s508, 3
      %s510 = scalar_select %p509, %s508, 3
      %s511 = smul.addr %s510, 8
      %s512 = scalar_lea.vmem %s4, %s511
      // Predicated region
      $region37: #{conv_block_forward.3} parent=35 // pred_check
        %p513 = pneg %p122
      $region38: #{conv_block_forward.3} parent=35 // pred_check_branch
        %515 = sbr.rel (%p513) target = $region40
      $region39: #{conv_block_forward.3} parent=35 // pred_region
        %s516 = smul.u32 2, %s15
      $region40: #{conv_block_forward.3} parent=35 // pred_fallthru
        _
    $region36: #{conv_block_forward.3} parent=5 // pred_fallthru
      _
    %p517 = scmp.le.s32.totalorder 2, %s10
    // Predicated region
    $region41: #{conv_block_forward.3} parent=5 // pred_check
      %p518 = pneg %p517
    $region42: #{conv_block_forward.3} parent=5 // pred_check_branch
      %520 = sbr.rel (%p518) target = $region44
    $region43: #{conv_block_forward.3} parent=5 // pred_region
      %s521 = ssub.s32 %s10, 2
      // Predicated region
      $region45: #{conv_block_forward.3} parent=43 // pred_check
        %p522 = pneg %p128
      $region46: #{conv_block_forward.3} parent=43 // pred_check_branch
        %524 = sbr.rel (%p522) target = $region48
      $region47: #{conv_block_forward.3} parent=43 // pred_region
        %s525 = smul.u32 2, %s16
        %p526 = scmp.lt.s32.totalorder %s525, 3
        %s527 = scalar_select %p526, %s525, 3
        %s528 = smul.addr %s527, 8
        %s529 = scalar_lea.vmem %s4, %s528
      $region48: #{conv_block_forward.3} parent=43 // pred_fallthru
        _
    $region44: #{conv_block_forward.3} parent=5 // pred_fallthru
      _
  $region6: #{conv_block_forward.3} parent=0 // loop_footer
    %s14 = sadd.s32 1, %s10
  $region7: #{conv_block_forward.3} parent=0 // loop_footer_branch
    %9 = sbr.rel target = $region3
  $region8: #{conv_block_forward.3} parent=0 // loop_exit
    _

</llo_original>
